<compile_context>
chip_gen: v6e
topology: v6e:2x2x1
jax: 0.10.0
libtpu: 0.0.40
codegen_flags: <defaults>
</compile_context>

<pallas_src>
from functools import partial

import jax
import jax.numpy as jnp
import numpy as np
from jax.experimental import pallas as pl
from jax.experimental.pallas import tpu as pltpu

LANE = 128   # vreg lane width (feature dims are zero-padded to this)
GB = 8       # graphs per grid step (output sublane alignment)


def _round_up(v, m):
    return (v + m - 1) // m * m


# ----------------------------------------------------------------------------
# Pallas kernel: one block of GB graphs, all 2-D lane-aligned MXU tiles
# ----------------------------------------------------------------------------
def _rumor_gcn_block_kernel(a_ref, x_ref, rx_ref, m_ref, w1_ref, b1_ref,
                            w2_ref, b2_ref, p_ref, r_ref, o_ref):
    """Fused conv1 -> root_extend -> relu -> conv2 -> relu -> scatter_mean.

    a_ref  : [NB, NB]   bf16  block-diagonal D^-1/2 (A+I) D^-1/2 for these GB graphs
    x_ref  : [NB, 128]  bf16  node features (feature dim zero-padded to 128)
    rx_ref : [NB, 128]  bf16  per-node root features x1[root_index][batch]
    m_ref  : [NB, 1]    f32   1.0 for real node rows, 0.0 for padding
    w1_ref : [128, 128] bf16  conv1 weight (padded)
    b1_ref : [1, 128]   f32   conv1 bias   (padded)
    w2_ref : [256, 128] bf16  conv2 weight: rows 0:128 act on h, rows 128:256 on root_x
    b2_ref : [1, 128]   f32   conv2 bias   (padded)
    p_ref  : [GB, NB]   bf16  binary graph-membership rows (no 1/count baked in)
    r_ref  : [GB, NB]   bf16  one-hot root-row selector
    o_ref  : [GB, 256]  f32   [ mean_g(relu(conv2)) | conv1_output[root_g] ]
    """
    a = a_ref[...]
    mask = m_ref[...]

    # conv1: h = A @ (x @ W1) + b1 ; zero padded rows so bias garbage never leaks.
    xw1 = jnp.dot(x_ref[...], w1_ref[...], preferred_element_type=jnp.float32)
    h = (jnp.dot(a, xw1.astype(jnp.bfloat16), preferred_element_type=jnp.float32)
         + b1_ref[...]) * mask

    # conv2 on relu(concat(h, root_x)) as ONE K=256 contraction (full MXU depth on
    # v6e/v7x); relu is exact, the concat is a lane-concat of two 128-wide slabs.
    cat = jnp.concatenate(
        [jnp.maximum(h, 0.0),
         jnp.maximum(rx_ref[...].astype(jnp.float32), 0.0)],
        axis=1).astype(jnp.bfloat16)
    xw2 = jnp.dot(cat, w2_ref[...], preferred_element_type=jnp.float32)
    h2 = jnp.maximum(
        jnp.dot(a, xw2.astype(jnp.bfloat16), preferred_element_type=jnp.float32)
        + b2_ref[...], 0.0) * mask

    # scatter_mean over graphs: exact binary P, f32 division by per-graph node count.
    # mean_g(root_extend2) == h[root_row(g)] == (R @ h)[g]  (mean of a constant).
    p = p_ref[...]
    counts = jnp.maximum(jnp.sum(p.astype(jnp.float32), axis=1, keepdims=True), 1.0)
    pooled_h2 = jnp.dot(p, h2.astype(jnp.bfloat16),
                        preferred_element_type=jnp.float32) / counts
    root_h = jnp.dot(r_ref[...], h.astype(jnp.bfloat16),
                     preferred_element_type=jnp.float32)
    o_ref[...] = jnp.concatenate([pooled_h2, root_h], axis=1)


# ----------------------------------------------------------------------------
# One-time parameter padding (hoisted out of the per-call path)
# ----------------------------------------------------------------------------
def prepare_params(params):
    w1 = jnp.asarray(params["w1"], jnp.float32)
    b1 = jnp.asarray(params["b1"], jnp.float32)
    w2 = jnp.asarray(params["w2"], jnp.float32)
    b2 = jnp.asarray(params["b2"], jnp.float32)
    feat, hid = w1.shape
    out = w2.shape[1]

    w1_p = (jnp.zeros((LANE, LANE), jnp.float32)
            .at[:feat, :hid].set(w1).astype(jnp.bfloat16))
    b1_p = jnp.zeros((1, LANE), jnp.float32).at[0, :hid].set(b1)
    # Fused conv2 weight: rows 0:hid act on the h-lanes of the concat, rows
    # LANE:LANE+feat act on the root-feature lanes.
    w2_p = (jnp.zeros((2 * LANE, LANE), jnp.float32)
            .at[:hid, :out].set(w2[:hid])
            .at[LANE:LANE + feat, :out].set(w2[hid:])
            .astype(jnp.bfloat16))
    b2_p = jnp.zeros((1, LANE), jnp.float32).at[0, :out].set(b2)
    return {"w1": w1_p, "b1": b1_p, "w2": w2_p, "b2": b2_p}


# ----------------------------------------------------------------------------
# Jitted wrapper: block-diagonal layout construction + single pallas_call
# ----------------------------------------------------------------------------
@partial(jax.jit, static_argnames=("num_graphs", "max_nodes_per_graph",
                                   "hidden_size", "out_size"))
def rumor_gcn_forward(x, edge_index, batch, root_index, padded_params, *,
                      num_graphs, max_nodes_per_graph, hidden_size, out_size):
    """Pallas implementation of _RumorGCN.forward (inference mode).

    Assumes the standard torch_geometric Batch layout: `batch` is sorted (nodes of each
    graph are contiguous) and every graph has <= max_nodes_per_graph nodes.
    """
    x = x.astype(jnp.float32)
    n, feat = x.shape

    n_pad = _round_up(max(max_nodes_per_graph, 1), 16)  # bf16 sublane tile
    nb = GB * n_pad                                     # node rows per block (mult of 128)
    g_pad = _round_up(num_graphs, GB)
    num_blocks = g_pad // GB
    n_rows = num_blocks * nb

    # ---- per-node padded row inside the block-diagonal layout -------------------
    seg_start = jnp.searchsorted(batch, batch)          # first node of each node's graph
    local = jnp.arange(n, dtype=batch.dtype) - seg_start.astype(batch.dtype)
    node_row = batch * n_pad + local                    # global stacked row
    node_col = node_row % nb                            # column within its block

    # ---- normalized adjacency (self loops, symmetric norm) scattered into blocks ----
    src, dst = edge_index[0], edge_index[1]
    loop = jnp.arange(n, dtype=src.dtype)
    src_all = jnp.concatenate([src, loop])
    dst_all = jnp.concatenate([dst, loop])
    deg = jnp.zeros((n,), jnp.float32).at[dst_all].add(1.0)
    dinv = jnp.where(deg > 0, jax.lax.rsqrt(deg), 0.0)
    w = dinv[src_all] * dinv[dst_all]
    a_blk = (jnp.zeros((n_rows, nb), jnp.float32)
             .at[node_row[dst_all], node_col[src_all]].add(w)
             .astype(jnp.bfloat16))

    # ---- node features and per-node root features in block layout -------------------
    def to_blocks(v):                                   # [n, feat] -> [n_rows, LANE]
        vp = jnp.zeros((n, LANE), jnp.float32).at[:, :feat].set(v)
        return (jnp.zeros((n_rows, LANE), jnp.float32)
                .at[node_row].set(vp).astype(jnp.bfloat16))

    x_blk = to_blocks(x)
    rx_blk = to_blocks(x[root_index][batch])            # root_extend row gather

    mask_blk = jnp.zeros((n_rows, 1), jnp.float32).at[node_row, 0].set(1.0)

    # ---- binary pooling / root-selection matrices (exact in bf16) -------------------
    p_blk = (jnp.zeros((g_pad, nb), jnp.float32)
             .at[batch, node_col].set(1.0).astype(jnp.bfloat16))
    r_blk = (jnp.zeros((g_pad, nb), jnp.float32)
             .at[jnp.arange(num_graphs), node_col[root_index]].set(1.0)
             .astype(jnp.bfloat16))

    w1_p, b1_p = padded_params["w1"], padded_params["b1"]
    w2_p, b2_p = padded_params["w2"], padded_params["b2"]

    operands = (a_blk, x_blk, rx_blk, mask_blk, w1_p, b1_p, w2_p, b2_p, p_blk, r_blk)
    in_specs = [
        pl.BlockSpec((nb, nb), lambda b: (b, 0)),           # A block       (streamed)
        pl.BlockSpec((nb, LANE), lambda b: (b, 0)),         # x block       (streamed)
        pl.BlockSpec((nb, LANE), lambda b: (b, 0)),         # root_x block  (streamed)
        pl.BlockSpec((nb, 1), lambda b: (b, 0)),            # node mask     (streamed)
        pl.BlockSpec((LANE, LANE), lambda b: (0, 0)),       # W1            (resident)
        pl.BlockSpec((1, LANE), lambda b: (0, 0)),          # b1            (resident)
        pl.BlockSpec((2 * LANE, LANE), lambda b: (0, 0)),   # W2 fused      (resident)
        pl.BlockSpec((1, LANE), lambda b: (0, 0)),          # b2            (resident)
        pl.BlockSpec((GB, nb), lambda b: (b, 0)),           # P block       (streamed)
        pl.BlockSpec((GB, nb), lambda b: (b, 0)),           # R block       (streamed)
    ]
    out_spec = pl.BlockSpec((GB, 2 * LANE), lambda b: (b, 0))

    # Explicit VMEM budget: double-buffered streamed blocks + resident weights +
    # generous headroom for in-kernel f32 temporaries.  Fits v7x's 64 MiB physical VMEM.
    bf16_b, f32_b = 2, 4
    step_bytes = (2 * (nb * nb * bf16_b + 2 * nb * LANE * bf16_b + nb * f32_b
                       + 2 * GB * nb * bf16_b + GB * 2 * LANE * f32_b)
                  + LANE * LANE * bf16_b + 2 * LANE * LANE * bf16_b
                  + 2 * LANE * f32_b
                  + 8 * nb * 2 * LANE * f32_b)
    vmem_limit = int(min(64 * 2 ** 20, max(8 * 2 ** 20, 4 * step_bytes)))

    # Advisory cost estimate for XLA's scheduler.
    flops = num_blocks * (2 * nb * LANE * LANE           # x @ W1
                          + 2 * nb * nb * LANE           # A @ xw1
                          + 2 * nb * 2 * LANE * LANE     # cat @ W2 (K=256)
                          + 2 * nb * nb * LANE           # A @ xw2
                          + 2 * 2 * GB * nb * LANE)      # P @ h2, R @ h
    bytes_accessed = sum(int(op.size) * op.dtype.itemsize for op in operands)
    bytes_accessed += g_pad * 2 * LANE * 4

    out_pad = pl.pallas_call(
        _rumor_gcn_block_kernel,
        out_shape=jax.ShapeDtypeStruct((g_pad, 2 * LANE), jnp.float32),
        grid=(num_blocks,),
        in_specs=in_specs,
        out_specs=out_spec,
        compiler_params=pltpu.CompilerParams(
            dimension_semantics=("parallel",),            # independent graph blocks
            vmem_limit_bytes=vmem_limit),
        cost_estimate=pl.CostEstimate(flops=int(flops), transcendentals=0,
                                      bytes_accessed=int(bytes_accessed)),
    )(*operands)

    pooled_h2 = out_pad[:num_graphs, :out_size]
    pooled_root2 = out_pad[:num_graphs, LANE:LANE + hidden_size]
    return jnp.concatenate([pooled_h2, pooled_root2], axis=1)


# ----------------------------------------------------------------------------
# Pure-JAX f32 reference (mirrors the PyTorch module semantics; validation only)
# ----------------------------------------------------------------------------
def _dense_norm_adj(edge_index, num_nodes):
    src, dst = edge_index[0], edge_index[1]
    loop = jnp.arange(num_nodes, dtype=src.dtype)
    src = jnp.concatenate([src, loop])
    dst = jnp.concatenate([dst, loop])
    w = jnp.ones(src.shape[0], jnp.float32)
    deg = jnp.zeros((num_nodes,), jnp.float32).at[dst].add(w)
    dinv = jnp.where(deg > 0, 1.0 / jnp.sqrt(deg), 0.0)
    norm = dinv[src] * dinv[dst]
    return jnp.zeros((num_nodes, num_nodes), jnp.float32).at[dst, src].add(norm)


def rumor_gcn_reference(x, edge_index, batch, root_index, params, num_graphs):
    x = x.astype(jnp.float32)
    w1, b1, w2, b2 = params["w1"], params["b1"], params["w2"], params["b2"]
    a_hat = _dense_norm_adj(edge_index, x.shape[0])

    x1 = x
    h = a_hat @ (x @ w1) + b1[None, :]
    x2 = h
    root_extend1 = x1[root_index][batch]
    xcat = jax.nn.relu(jnp.concatenate([h, root_extend1], axis=1))
    h2 = jax.nn.relu(a_hat @ (xcat @ w2) + b2[None, :])
    root_extend2 = x2[root_index][batch]
    xcat2 = jnp.concatenate([h2, root_extend2], axis=1)

    g_mat = (batch[:, None] == jnp.arange(num_graphs)[None, :]).astype(jnp.float32)
    counts = jnp.maximum(jnp.sum(g_mat, axis=0), 1.0)
    return (g_mat.T @ xcat2) / counts[:, None]            # scatter_mean


# ----------------------------------------------------------------------------
# Main
# ----------------------------------------------------------------------------
if __name__ == "__main__":
    feature_size, hidden_size, out_size = 16, 32, 16
    num_graphs, nodes_per_graph = 3, 4
    num_nodes = num_graphs * nodes_per_graph

    key = jax.random.PRNGKey(0)
    k_x, k_w1, k_b1, k_w2, k_b2 = jax.random.split(key, 5)

    x = jax.random.normal(k_x, (num_nodes, feature_size), jnp.float32)

    # Small propagation trees: per graph (root->c1, root->c2, c1->c3)
    src, dst, batch_list = [], [], []
    for g in range(num_graphs):
        base = g * nodes_per_graph
        src += [base, base, base + 1]
        dst += [base + 1, base + 2, base + 3]
        batch_list += [g] * nodes_per_graph
    edge_index = jnp.array([src, dst], dtype=jnp.int32)                      # [2, E]
    batch = jnp.array(batch_list, dtype=jnp.int32)                           # [N]
    root_index = jnp.arange(num_graphs, dtype=jnp.int32) * nodes_per_graph   # [G]

    def glorot(k, shape):
        lim = float(np.sqrt(6.0 / (shape[0] + shape[1])))
        return jax.random.uniform(k, shape, jnp.float32, -lim, lim)

    params = {
        "w1": glorot(k_w1, (feature_size, hidden_size)),
        "b1": jax.random.uniform(k_b1, (hidden_size,), jnp.float32, -0.1, 0.1),
        "w2": glorot(k_w2, (hidden_size + feature_size, out_size)),
        "b2": jax.random.uniform(k_b2, (out_size,), jnp.float32, -0.1, 0.1),
    }

    padded_params = prepare_params(params)   # one-time, outside the per-call path

    out = rumor_gcn_forward(
        x, edge_index, batch, root_index, padded_params,
        num_graphs=num_graphs, max_nodes_per_graph=nodes_per_graph,
        hidden_size=hidden_size, out_size=out_size)
    out = jax.block_until_ready(out)

    ref = rumor_gcn_reference(x, edge_index, batch, root_index, params, num_graphs)
    # bf16 MXU operands (f32 accumulation) vs a pure-f32 reference -> loose tolerance.
    np.testing.assert_allclose(np.asarray(out), np.asarray(ref), rtol=3e-2, atol=3e-2)
    assert out.shape == (num_graphs, out_size + hidden_size)

    print("KERNEL_OK")
</pallas_src>

<mosaic_0001>
module attributes {stable_mosaic.version = 11 : i64} {
  func.func @_rumor_gcn_block_kernel(%arg0: i32, %arg1: memref<128x128xbf16, #tpu.memory_space<vmem>>, %arg2: memref<128x128xbf16, #tpu.memory_space<vmem>>, %arg3: memref<128x128xbf16, #tpu.memory_space<vmem>>, %arg4: memref<128x1xf32, #tpu.memory_space<vmem>>, %arg5: memref<128x128xbf16, #tpu.memory_space<vmem>>, %arg6: memref<1x128xf32, #tpu.memory_space<vmem>>, %arg7: memref<256x128xbf16, #tpu.memory_space<vmem>>, %arg8: memref<1x128xf32, #tpu.memory_space<vmem>>, %arg9: memref<8x128xbf16, #tpu.memory_space<vmem>>, %arg10: memref<8x128xbf16, #tpu.memory_space<vmem>>, %arg11: memref<8x256xf32, #tpu.memory_space<vmem>>) attributes {dimension_semantics = [#tpu.dimension_semantics<parallel>], iteration_bounds = array<i64: 1>, scalar_prefetch = 0 : i64, scratch_operands = 0 : i64, tpu.core_type = #tpu.core_type<tc>, window_params = [{transform_indices = @transform_0, window_bounds = array<i64: 128, 128>}, {transform_indices = @transform_1, window_bounds = array<i64: 128, 128>}, {transform_indices = @transform_2, window_bounds = array<i64: 128, 128>}, {transform_indices = @transform_3, window_bounds = array<i64: 128, 1>}, {pipeline_mode = #tpu.pipeline_mode<synchronous>, transform_indices = @transform_4, window_bounds = array<i64: 128, 128>}, {pipeline_mode = #tpu.pipeline_mode<synchronous>, transform_indices = @transform_5, window_bounds = array<i64: 1, 128>}, {pipeline_mode = #tpu.pipeline_mode<synchronous>, transform_indices = @transform_6, window_bounds = array<i64: 256, 128>}, {pipeline_mode = #tpu.pipeline_mode<synchronous>, transform_indices = @transform_7, window_bounds = array<i64: 1, 128>}, {transform_indices = @transform_8, window_bounds = array<i64: 8, 128>}, {transform_indices = @transform_9, window_bounds = array<i64: 8, 128>}, {transform_indices = @transform_10, window_bounds = array<i64: 8, 256>}]} {
    %c0 = arith.constant 0 : index
    %c0_0 = arith.constant 0 : index
    %0 = vector.load %arg1[%c0, %c0_0] : memref<128x128xbf16, #tpu.memory_space<vmem>>, vector<128x128xbf16>
    %c0_1 = arith.constant 0 : index
    %c0_2 = arith.constant 0 : index
    %1 = vector.load %arg4[%c0_1, %c0_2] : memref<128x1xf32, #tpu.memory_space<vmem>>, vector<128x1xf32>
    %c0_3 = arith.constant 0 : index
    %c0_4 = arith.constant 0 : index
    %2 = vector.load %arg2[%c0_3, %c0_4] : memref<128x128xbf16, #tpu.memory_space<vmem>>, vector<128x128xbf16>
    %c0_5 = arith.constant 0 : index
    %c0_6 = arith.constant 0 : index
    %3 = vector.load %arg5[%c0_5, %c0_6] : memref<128x128xbf16, #tpu.memory_space<vmem>>, vector<128x128xbf16>
    %cst = arith.constant dense<0.000000e+00> : vector<128x128xf32>
    %4 = tpu.matmul %2, %3, %cst {dimension_numbers = #tpu.dot_dimension_numbers<[1], [0], [0], [1], [0, 0, 1, 1], [], []>} : vector<128x128xbf16>, vector<128x128xbf16>, vector<128x128xf32> -> vector<128x128xf32>
    %5 = arith.truncf %4 : vector<128x128xf32> to vector<128x128xbf16>
    %cst_7 = arith.constant dense<0.000000e+00> : vector<128x128xf32>
    %6 = tpu.matmul %0, %5, %cst_7 {dimension_numbers = #tpu.dot_dimension_numbers<[1], [0], [0], [1], [0, 0, 1, 1], [], []>} : vector<128x128xbf16>, vector<128x128xbf16>, vector<128x128xf32> -> vector<128x128xf32>
    %c0_8 = arith.constant 0 : index
    %c0_9 = arith.constant 0 : index
    %7 = vector.load %arg6[%c0_8, %c0_9] : memref<1x128xf32, #tpu.memory_space<vmem>>, vector<1x128xf32>
    %8 = vector.broadcast %7 : vector<1x128xf32> to vector<128x128xf32>
    %9 = arith.addf %6, %8 : vector<128x128xf32>
    %10 = vector.broadcast %1 : vector<128x1xf32> to vector<128x128xf32>
    %11 = arith.mulf %9, %10 : vector<128x128xf32>
    %cst_10 = arith.constant 0.000000e+00 : f32
    %12 = vector.broadcast %cst_10 : f32 to vector<128x128xf32>
    %13 = arith.maximumf %11, %12 : vector<128x128xf32>
    %c0_11 = arith.constant 0 : index
    %c0_12 = arith.constant 0 : index
    %14 = vector.load %arg3[%c0_11, %c0_12] : memref<128x128xbf16, #tpu.memory_space<vmem>>, vector<128x128xbf16>
    %15 = arith.extf %14 : vector<128x128xbf16> to vector<128x128xf32>
    %cst_13 = arith.constant 0.000000e+00 : f32
    %16 = vector.broadcast %cst_13 : f32 to vector<128x128xf32>
    %17 = arith.maximumf %15, %16 : vector<128x128xf32>
    %18 = tpu.concatenate %13, %17 in 1 : vector<128x128xf32>, vector<128x128xf32> -> vector<128x256xf32>
    %19 = arith.truncf %18 : vector<128x256xf32> to vector<128x256xbf16>
    %c0_14 = arith.constant 0 : index
    %c0_15 = arith.constant 0 : index
    %20 = vector.load %arg7[%c0_14, %c0_15] : memref<256x128xbf16, #tpu.memory_space<vmem>>, vector<256x128xbf16>
    %cst_16 = arith.constant dense<0.000000e+00> : vector<128x128xf32>
    %21 = tpu.matmul %19, %20, %cst_16 {dimension_numbers = #tpu.dot_dimension_numbers<[1], [0], [0], [1], [0, 0, 1, 1], [], []>} : vector<128x256xbf16>, vector<256x128xbf16>, vector<128x128xf32> -> vector<128x128xf32>
    %22 = arith.truncf %21 : vector<128x128xf32> to vector<128x128xbf16>
    %cst_17 = arith.constant dense<0.000000e+00> : vector<128x128xf32>
    %23 = tpu.matmul %0, %22, %cst_17 {dimension_numbers = #tpu.dot_dimension_numbers<[1], [0], [0], [1], [0, 0, 1, 1], [], []>} : vector<128x128xbf16>, vector<128x128xbf16>, vector<128x128xf32> -> vector<128x128xf32>
    %c0_18 = arith.constant 0 : index
    %c0_19 = arith.constant 0 : index
    %24 = vector.load %arg8[%c0_18, %c0_19] : memref<1x128xf32, #tpu.memory_space<vmem>>, vector<1x128xf32>
    %25 = vector.broadcast %24 : vector<1x128xf32> to vector<128x128xf32>
    %26 = arith.addf %23, %25 : vector<128x128xf32>
    %cst_20 = arith.constant 0.000000e+00 : f32
    %27 = vector.broadcast %cst_20 : f32 to vector<128x128xf32>
    %28 = arith.maximumf %26, %27 : vector<128x128xf32>
    %29 = vector.broadcast %1 : vector<128x1xf32> to vector<128x128xf32>
    %30 = arith.mulf %28, %29 : vector<128x128xf32>
    %c0_21 = arith.constant 0 : index
    %c0_22 = arith.constant 0 : index
    %31 = vector.load %arg9[%c0_21, %c0_22] : memref<8x128xbf16, #tpu.memory_space<vmem>>, vector<8x128xbf16>
    %32 = arith.extf %31 : vector<8x128xbf16> to vector<8x128xf32>
    %cst_23 = arith.constant dense<0.000000e+00> : vector<8xf32>
    %33 = vector.multi_reduction <add>, %32, %cst_23 [1] : vector<8x128xf32> to vector<8xf32>
    %34 = vector.shape_cast %33 : vector<8xf32> to vector<8x1xf32>
    %cst_24 = arith.constant 1.000000e+00 : f32
    %35 = vector.broadcast %cst_24 : f32 to vector<8x1xf32>
    %36 = arith.maximumf %34, %35 : vector<8x1xf32>
    %37 = arith.truncf %30 : vector<128x128xf32> to vector<128x128xbf16>
    %cst_25 = arith.constant dense<0.000000e+00> : vector<8x128xf32>
    %38 = tpu.matmul %31, %37, %cst_25 {dimension_numbers = #tpu.dot_dimension_numbers<[1], [0], [0], [1], [0, 0, 1, 1], [], []>} : vector<8x128xbf16>, vector<128x128xbf16>, vector<8x128xf32> -> vector<8x128xf32>
    %39 = vector.broadcast %36 : vector<8x1xf32> to vector<8x128xf32>
    %40 = arith.divf %38, %39 : vector<8x128xf32>
    %c0_26 = arith.constant 0 : index
    %c0_27 = arith.constant 0 : index
    %41 = vector.load %arg10[%c0_26, %c0_27] : memref<8x128xbf16, #tpu.memory_space<vmem>>, vector<8x128xbf16>
    %42 = arith.truncf %11 : vector<128x128xf32> to vector<128x128xbf16>
    %cst_28 = arith.constant dense<0.000000e+00> : vector<8x128xf32>
    %43 = tpu.matmul %41, %42, %cst_28 {dimension_numbers = #tpu.dot_dimension_numbers<[1], [0], [0], [1], [0, 0, 1, 1], [], []>} : vector<8x128xbf16>, vector<128x128xbf16>, vector<8x128xf32> -> vector<8x128xf32>
    %44 = tpu.concatenate %40, %43 in 1 : vector<8x128xf32>, vector<8x128xf32> -> vector<8x256xf32>
    %c0_29 = arith.constant 0 : index
    %c0_30 = arith.constant 0 : index
    %45 = vector.load %arg11[%c0_29, %c0_30] : memref<8x256xf32, #tpu.memory_space<vmem>>, vector<8x256xf32>
    tpu.vector_store %arg11[%c0_29, %c0_30], %44 {strides = array<i32>} : memref<8x256xf32, #tpu.memory_space<vmem>>, vector<8x256xf32>,
    return
  }
  func.func @transform_0(%arg0: i32) -> (i32, i32) {
    %c0_i32 = arith.constant 0 : i32
    %c0_i32_0 = arith.constant 0 : i32
    return %arg0, %c0_i32 : i32, i32
  }
  func.func @transform_1(%arg0: i32) -> (i32, i32) {
    %c0_i32 = arith.constant 0 : i32
    %c0_i32_0 = arith.constant 0 : i32
    return %arg0, %c0_i32 : i32, i32
  }
  func.func @transform_2(%arg0: i32) -> (i32, i32) {
    %c0_i32 = arith.constant 0 : i32
    %c0_i32_0 = arith.constant 0 : i32
    return %arg0, %c0_i32 : i32, i32
  }
  func.func @transform_3(%arg0: i32) -> (i32, i32) {
    %c0_i32 = arith.constant 0 : i32
    %c0_i32_0 = arith.constant 0 : i32
    return %arg0, %c0_i32 : i32, i32
  }
  func.func @transform_4(%arg0: i32) -> (i32, i32) {
    %c0_i32 = arith.constant 0 : i32
    %c0_i32_0 = arith.constant 0 : i32
    %c0_i32_1 = arith.constant 0 : i32
    return %c0_i32, %c0_i32_0 : i32, i32
  }
  func.func @transform_5(%arg0: i32) -> (i32, i32) {
    %c0_i32 = arith.constant 0 : i32
    %c0_i32_0 = arith.constant 0 : i32
    %c0_i32_1 = arith.constant 0 : i32
    return %c0_i32, %c0_i32_0 : i32, i32
  }
  func.func @transform_6(%arg0: i32) -> (i32, i32) {
    %c0_i32 = arith.constant 0 : i32
    %c0_i32_0 = arith.constant 0 : i32
    %c0_i32_1 = arith.constant 0 : i32
    return %c0_i32, %c0_i32_0 : i32, i32
  }
  func.func @transform_7(%arg0: i32) -> (i32, i32) {
    %c0_i32 = arith.constant 0 : i32
    %c0_i32_0 = arith.constant 0 : i32
    %c0_i32_1 = arith.constant 0 : i32
    return %c0_i32, %c0_i32_0 : i32, i32
  }
  func.func @transform_8(%arg0: i32) -> (i32, i32) {
    %c0_i32 = arith.constant 0 : i32
    %c0_i32_0 = arith.constant 0 : i32
    return %arg0, %c0_i32 : i32, i32
  }
  func.func @transform_9(%arg0: i32) -> (i32, i32) {
    %c0_i32 = arith.constant 0 : i32
    %c0_i32_0 = arith.constant 0 : i32
    return %arg0, %c0_i32 : i32, i32
  }
  func.func @transform_10(%arg0: i32) -> (i32, i32) {
    %c0_i32 = arith.constant 0 : i32
    %c0_i32_0 = arith.constant 0 : i32
    return %arg0, %c0_i32 : i32, i32
  }
}

</mosaic_0001>

<llo_original>
// kernel: custom-call.6
$region0: #{custom-call.6}
  %s0 = inlined_call_operand.vmem [shape: u32[12], index: 0, kind: output, shape index: {}]

// kernel: mul.3
$region0: #{mul.3}
  #allocation0 [shape = 's32[1]{0}', space=sflag, size = 0x4, scoped, tag = 'scoped memory for mul.3']
  %s0 = inlined_call_operand.vmem [shape: f32[21], index: 0, kind: input, shape index: {}]
  %s1 = inlined_call_operand.vmem [shape: f32[21], index: 1, kind: input, shape index: {}]
  %s2 = inlined_call_operand.vmem [shape: f32[21], index: 2, kind: output, shape index: {}]
  %v3 = vld [vmem:[%s0] sm:$0x1]
  %v4 = vld [vmem:[%s1] sm:$0x1]
  %5 = xla_tuple %v3, %v4
  %6 = xla_tuple %5
  %v7 = vmul.f32 %v3, %v4
  %8 = xla_tuple %v7
  %9 = vst [vmem:[%s2] sm:$0x1] %v7

// kernel: rumor_gcn_forward.1
$region0: #{rumor_gcn_forward.1}
  #allocation0 [shape = 'u32[]', space=smem, size = 0x4, offset = 0x4, fixed_abs, tag = 'smem constant byte address 0x4 - core index']
  #allocation1 [shape = 'u32[144,128]{1,0:T(1,128)}', space=vmem, size = 0x12000, scoped, tag = 'internal scratch']
  %s0 = inlined_call_operand.vmem [shape: bf16[128,128], index: 0, kind: input, shape index: {}]
  %s1 = inlined_call_operand.vmem [shape: bf16[128,128], index: 1, kind: input, shape index: {}]
  %s2 = inlined_call_operand.vmem [shape: bf16[128,128], index: 2, kind: input, shape index: {}]
  %s3 = inlined_call_operand.vmem [shape: f32[128,1], index: 3, kind: input, shape index: {}]
  %s4 = inlined_call_operand.vmem [shape: bf16[128,128], index: 4, kind: input, shape index: {}]
  %s5 = inlined_call_operand.vmem [shape: f32[1,128], index: 5, kind: input, shape index: {}]
  %s6 = inlined_call_operand.vmem [shape: bf16[256,128], index: 6, kind: input, shape index: {}]
  %s7 = inlined_call_operand.vmem [shape: f32[1,128], index: 7, kind: input, shape index: {}]
  %s8 = inlined_call_operand.vmem [shape: bf16[8,128], index: 8, kind: input, shape index: {}]
  %s9 = inlined_call_operand.vmem [shape: bf16[8,128], index: 9, kind: input, shape index: {}]
  %s10 = inlined_call_operand.vmem [shape: f32[8,256], index: 10, kind: output, shape index: {}]
  %s11 = sld [smem:[#allocation0]]
  $region50: #{rumor_gcn_forward.1} parent=0
    _
  %s13 = ssub.s32 1, %s11
  %s14 = scalar_select 0, %s13, %s11
  // Predicated region
  $region2: #{rumor_gcn_forward.1} parent=0 // pred_check
    _
  $region3: #{rumor_gcn_forward.1} parent=0 // pred_check_branch
    %16 = sbr.rel (0) target = $region5
  $region4: #{rumor_gcn_forward.1} parent=0 // pred_region
    _
  $region5: #{rumor_gcn_forward.1} parent=0 // pred_fallthru
    _
  // Predicated region
  $region6: #{rumor_gcn_forward.1} parent=0 // pred_check
    _
  $region7: #{rumor_gcn_forward.1} parent=0 // pred_check_branch
    %18 = sbr.rel (0) target = $region9
  $region8: #{rumor_gcn_forward.1} parent=0 // pred_region
    _
  $region9: #{rumor_gcn_forward.1} parent=0 // pred_fallthru
    _
  // Predicated region
  $region10: #{rumor_gcn_forward.1} parent=0 // pred_check
    _
  $region11: #{rumor_gcn_forward.1} parent=0 // pred_check_branch
    %20 = sbr.rel (0) target = $region13
  $region12: #{rumor_gcn_forward.1} parent=0 // pred_region
    _
  $region13: #{rumor_gcn_forward.1} parent=0 // pred_fallthru
    _
  // Predicated region
  $region14: #{rumor_gcn_forward.1} parent=0 // pred_check
    _
  $region15: #{rumor_gcn_forward.1} parent=0 // pred_check_branch
    %22 = sbr.rel (0) target = $region17
  $region16: #{rumor_gcn_forward.1} parent=0 // pred_region
    _
  $region17: #{rumor_gcn_forward.1} parent=0 // pred_fallthru
    _
  // Predicated region
  $region18: #{rumor_gcn_forward.1} parent=0 // pred_check
    _
  $region19: #{rumor_gcn_forward.1} parent=0 // pred_check_branch
    %24 = sbr.rel (0) target = $region21
  $region20: #{rumor_gcn_forward.1} parent=0 // pred_region
    _
  $region21: #{rumor_gcn_forward.1} parent=0 // pred_fallthru
    _
  // Predicated region
  $region22: #{rumor_gcn_forward.1} parent=0 // pred_check
    _
  $region23: #{rumor_gcn_forward.1} parent=0 // pred_check_branch
    %26 = sbr.rel (0) target = $region25
  $region24: #{rumor_gcn_forward.1} parent=0 // pred_region
    _
  $region25: #{rumor_gcn_forward.1} parent=0 // pred_fallthru
    _
  // Predicated region
  $region26: #{rumor_gcn_forward.1} parent=0 // pred_check
    _
  $region27: #{rumor_gcn_forward.1} parent=0 // pred_check_branch
    %28 = sbr.rel (0) target = $region29
  $region28: #{rumor_gcn_forward.1} parent=0 // pred_region
    _
  $region29: #{rumor_gcn_forward.1} parent=0 // pred_fallthru
    _
  // Predicated region
  $region30: #{rumor_gcn_forward.1} parent=0 // pred_check
    _
  $region31: #{rumor_gcn_forward.1} parent=0 // pred_check_branch
    %30 = sbr.rel (0) target = $region33
  $region32: #{rumor_gcn_forward.1} parent=0 // pred_region
    _
  $region33: #{rumor_gcn_forward.1} parent=0 // pred_fallthru
    _
  // Predicated region
  $region34: #{rumor_gcn_forward.1} parent=0 // pred_check
    _
  $region35: #{rumor_gcn_forward.1} parent=0 // pred_check_branch
    %32 = sbr.rel (0) target = $region37
  $region36: #{rumor_gcn_forward.1} parent=0 // pred_region
    _
  $region37: #{rumor_gcn_forward.1} parent=0 // pred_fallthru
    _
  // Predicated region
  $region38: #{rumor_gcn_forward.1} parent=0 // pred_check
    _
  $region39: #{rumor_gcn_forward.1} parent=0 // pred_check_branch
    %34 = sbr.rel (0) target = $region41
  $region40: #{rumor_gcn_forward.1} parent=0 // pred_region
    _
  $region41: #{rumor_gcn_forward.1} parent=0 // pred_fallthru
    _
  %v36 = vld [vmem:[%s0] sm:$0xf]
  %v37 = vld [vmem:[%s0 + $0x4] sm:$0xf]
  %v38 = vld [vmem:[%s0 + $0x8] sm:$0xf]
  %v39 = vld [vmem:[%s0 + $0xc] sm:$0xf]
  %v40 = vld [vmem:[%s0 + $0x10] sm:$0xf]
  %v41 = vld [vmem:[%s0 + $0x14] sm:$0xf]
  %v42 = vld [vmem:[%s0 + $0x18] sm:$0xf]
  %v43 = vld [vmem:[%s0 + $0x1c] sm:$0xf]
  %v44 = vld [vmem:[%s0 + $0x20] sm:$0xf]
  %v45 = vld [vmem:[%s0 + $0x24] sm:$0xf]
  %v46 = vld [vmem:[%s0 + $0x28] sm:$0xf]
  %v47 = vld [vmem:[%s0 + $0x2c] sm:$0xf]
  %v48 = vld [vmem:[%s0 + $0x30] sm:$0xf]
  %v49 = vld [vmem:[%s0 + $0x34] sm:$0xf]
  %v50 = vld [vmem:[%s0 + $0x38] sm:$0xf]
  %v51 = vld [vmem:[%s0 + $0x3c] sm:$0xf]
  %v52 = vld [vmem:[%s3] sm:$0xff]
  %v53 = vld [vmem:[%s3 + $0x8] sm:$0xff]
  %v54 = vld [vmem:[%s3 + $0x10] sm:$0xff]
  %v55 = vld [vmem:[%s3 + $0x18] sm:$0xff]
  %v56 = vld [vmem:[%s3 + $0x20] sm:$0xff]
  %v57 = vld [vmem:[%s3 + $0x28] sm:$0xff]
  %v58 = vld [vmem:[%s3 + $0x30] sm:$0xff]
  %v59 = vld [vmem:[%s3 + $0x38] sm:$0xff]
  %v60 = vld [vmem:[%s3 + $0x40] sm:$0xff]
  %v61 = vld [vmem:[%s3 + $0x48] sm:$0xff]
  %v62 = vld [vmem:[%s3 + $0x50] sm:$0xff]
  %v63 = vld [vmem:[%s3 + $0x58] sm:$0xff]
  %v64 = vld [vmem:[%s3 + $0x60] sm:$0xff]
  %v65 = vld [vmem:[%s3 + $0x68] sm:$0xff]
  %v66 = vld [vmem:[%s3 + $0x70] sm:$0xff]
  %v67 = vld [vmem:[%s3 + $0x78] sm:$0xff]
  %v68 = vld [vmem:[%s1] sm:$0xf]
  %v69 = vld [vmem:[%s1 + $0x4] sm:$0xf]
  %v70 = vld [vmem:[%s1 + $0x8] sm:$0xf]
  %v71 = vld [vmem:[%s1 + $0xc] sm:$0xf]
  %v72 = vld [vmem:[%s1 + $0x10] sm:$0xf]
  %v73 = vld [vmem:[%s1 + $0x14] sm:$0xf]
  %v74 = vld [vmem:[%s1 + $0x18] sm:$0xf]
  %v75 = vld [vmem:[%s1 + $0x1c] sm:$0xf]
  %v76 = vld [vmem:[%s1 + $0x20] sm:$0xf]
  %v77 = vld [vmem:[%s1 + $0x24] sm:$0xf]
  %v78 = vld [vmem:[%s1 + $0x28] sm:$0xf]
  %v79 = vld [vmem:[%s1 + $0x2c] sm:$0xf]
  %v80 = vld [vmem:[%s1 + $0x30] sm:$0xf]
  %v81 = vld [vmem:[%s1 + $0x34] sm:$0xf]
  %v82 = vld [vmem:[%s1 + $0x38] sm:$0xf]
  %v83 = vld [vmem:[%s1 + $0x3c] sm:$0xf]
  %v84 = vld [vmem:[%s4] sm:$0xf]
  %v85 = vld [vmem:[%s4 + $0x4] sm:$0xf]
  %v86 = vld [vmem:[%s4 + $0x8] sm:$0xf]
  %v87 = vld [vmem:[%s4 + $0xc] sm:$0xf]
  %v88 = vld [vmem:[%s4 + $0x10] sm:$0xf]
  %v89 = vld [vmem:[%s4 + $0x14] sm:$0xf]
  %v90 = vld [vmem:[%s4 + $0x18] sm:$0xf]
  %v91 = vld [vmem:[%s4 + $0x1c] sm:$0xf]
  %v92 = vld [vmem:[%s4 + $0x20] sm:$0xf]
  %v93 = vld [vmem:[%s4 + $0x24] sm:$0xf]
  %v94 = vld [vmem:[%s4 + $0x28] sm:$0xf]
  %v95 = vld [vmem:[%s4 + $0x2c] sm:$0xf]
  %v96 = vld [vmem:[%s4 + $0x30] sm:$0xf]
  %v97 = vld [vmem:[%s4 + $0x34] sm:$0xf]
  %v98 = vld [vmem:[%s4 + $0x38] sm:$0xf]
  %v99 = vld [vmem:[%s4 + $0x3c] sm:$0xf]
  %v116 = vunpack.c.l.b16 %v68
  %v117 = vunpack.c.l.b16 %v69
  %v118 = vunpack.c.l.b16 %v70
  %v119 = vunpack.c.l.b16 %v71
  %v120 = vunpack.c.l.b16 %v72
  %v121 = vunpack.c.l.b16 %v73
  %v122 = vunpack.c.l.b16 %v74
  %v123 = vunpack.c.l.b16 %v75
  %v124 = vunpack.c.l.b16 %v76
  %v125 = vunpack.c.l.b16 %v77
  %v126 = vunpack.c.l.b16 %v78
  %v127 = vunpack.c.l.b16 %v79
  %v128 = vunpack.c.l.b16 %v80
  %v129 = vunpack.c.l.b16 %v81
  %v130 = vunpack.c.l.b16 %v82
  %v131 = vunpack.c.l.b16 %v83
  %v132 = vpack.c.b16 %v117, %v116
  %v133 = vpack.c.b16 %v119, %v118
  %v134 = vpack.c.b16 %v121, %v120
  %v135 = vpack.c.b16 %v123, %v122
  %v136 = vpack.c.b16 %v125, %v124
  %v137 = vpack.c.b16 %v127, %v126
  %v138 = vpack.c.b16 %v129, %v128
  %v139 = vpack.c.b16 %v131, %v130
  %v164 = vunpack.c.l.b16 %v84
  %v165 = vunpack.c.l.b16 %v85
  %v166 = vunpack.c.l.b16 %v86
  %v167 = vunpack.c.l.b16 %v87
  %v168 = vunpack.c.l.b16 %v88
  %v169 = vunpack.c.l.b16 %v89
  %v170 = vunpack.c.l.b16 %v90
  %v171 = vunpack.c.l.b16 %v91
  %v172 = vunpack.c.l.b16 %v92
  %v173 = vunpack.c.l.b16 %v93
  %v174 = vunpack.c.l.b16 %v94
  %v175 = vunpack.c.l.b16 %v95
  %v176 = vunpack.c.l.b16 %v96
  %v177 = vunpack.c.l.b16 %v97
  %v178 = vunpack.c.l.b16 %v98
  %v179 = vunpack.c.l.b16 %v99
  %v180 = vpack.c.b16 %v165, %v164
  %v181 = vpack.c.b16 %v167, %v166
  %v182 = vpack.c.b16 %v169, %v168
  %v183 = vpack.c.b16 %v171, %v170
  %v184 = vpack.c.b16 %v173, %v172
  %v185 = vpack.c.b16 %v175, %v174
  %v186 = vpack.c.b16 %v177, %v176
  %v187 = vpack.c.b16 %v179, %v178
  %196 = vmatprep.subr.bf16.mxu0 0
  %197 = vmatpush1.bf16.msra.mxu0 %v187
  %198 = vmatprep.subr.bf16.mxu0 0
  %199 = vmatpush1.bf16.msra.mxu0 %v186
  %200 = vmatprep.subr.bf16.mxu0 0
  %201 = vmatpush1.bf16.msra.mxu0 %v185
  %202 = vmatprep.subr.bf16.mxu0 0
  %203 = vmatpush1.bf16.msra.mxu0 %v184
  %204 = vmatprep.subr.bf16.mxu0 0
  %205 = vmatpush1.bf16.msra.mxu0 %v183
  %206 = vmatprep.subr.bf16.mxu0 0
  %207 = vmatpush1.bf16.msra.mxu0 %v182
  %208 = vmatprep.subr.bf16.mxu0 0
  %209 = vmatpush1.bf16.msra.mxu0 %v181
  %210 = vmatprep.subr.bf16.mxu0 0
  %211 = vmatpush1.bf16.msra.mxu0 %v180
  %212 = vmatprep.subr.bf16.mxu0 0
  %213 = vmatpush2.bf16.msra.mxu0 0
  %214 = vmatprep.subr.bf16.mxu0 0
  %215 = vmatpush2.bf16.msra.mxu0 0
  %216 = vmatprep.subr.bf16.mxu0 0
  %217 = vmatpush2.bf16.msra.mxu0 0
  %218 = vmatprep.subr.bf16.mxu0 0
  %219 = vmatpush2.bf16.msra.mxu0 0
  %220 = vmatprep.subr.bf16.mxu0 0
  %221 = vmatpush2.bf16.msra.mxu0 0
  %222 = vmatprep.subr.bf16.mxu0 0
  %223 = vmatpush2.bf16.msra.mxu0 0
  %224 = vmatprep.subr.bf16.mxu0 0
  %225 = vmatpush2.bf16.msra.mxu0 0
  %226 = vmatprep.subr.bf16.mxu0 0
  %227 = vmatpush2.bf16.msra.mxu0 0
  %228 = vmatprep.mubr.bf16.mxu0 0
  %229 = vmatmul.mubr.bf16.gmra.mxu0 %v132
  %v230 = vpop.f32.mrf.mxu0
  %v231 = vadd.f32 0.0, %v230
  %v232 = vpop.f32.mrf.mxu0
  %v233 = vpop.f32.mrf.mxu0
  %v234 = vadd.f32 0.0, %v233
  %v235 = vpop.f32.mrf.mxu0
  %236 = vmatprep.mubr.bf16.mxu0 0
  %237 = vmatmul.mubr.bf16.gmra.mxu0 %v133
  %v238 = vpop.f32.mrf.mxu0
  %v239 = vadd.f32 0.0, %v238
  %v240 = vpop.f32.mrf.mxu0
  %v241 = vpop.f32.mrf.mxu0
  %v242 = vadd.f32 0.0, %v241
  %v243 = vpop.f32.mrf.mxu0
  %244 = vmatprep.mubr.bf16.mxu0 0
  %245 = vmatmul.mubr.bf16.gmra.mxu0 %v134
  %v246 = vpop.f32.mrf.mxu0
  %v247 = vadd.f32 0.0, %v246
  %v248 = vpop.f32.mrf.mxu0
  %v249 = vpop.f32.mrf.mxu0
  %v250 = vadd.f32 0.0, %v249
  %v251 = vpop.f32.mrf.mxu0
  %252 = vmatprep.mubr.bf16.mxu0 0
  %253 = vmatmul.mubr.bf16.gmra.mxu0 %v135
  %v254 = vpop.f32.mrf.mxu0
  %v255 = vadd.f32 0.0, %v254
  %v256 = vpop.f32.mrf.mxu0
  %v257 = vpop.f32.mrf.mxu0
  %v258 = vadd.f32 0.0, %v257
  %v259 = vpop.f32.mrf.mxu0
  %260 = vmatprep.mubr.bf16.mxu0 0
  %261 = vmatmul.mubr.bf16.gmra.mxu0 %v136
  %v262 = vpop.f32.mrf.mxu0
  %v263 = vadd.f32 0.0, %v262
  %v264 = vpop.f32.mrf.mxu0
  %v265 = vpop.f32.mrf.mxu0
  %v266 = vadd.f32 0.0, %v265
  %v267 = vpop.f32.mrf.mxu0
  %268 = vmatprep.mubr.bf16.mxu0 0
  %269 = vmatmul.mubr.bf16.gmra.mxu0 %v137
  %v270 = vpop.f32.mrf.mxu0
  %v271 = vadd.f32 0.0, %v270
  %v272 = vpop.f32.mrf.mxu0
  %v273 = vpop.f32.mrf.mxu0
  %v274 = vadd.f32 0.0, %v273
  %v275 = vpop.f32.mrf.mxu0
  %276 = vmatprep.mubr.bf16.mxu0 0
  %277 = vmatmul.mubr.bf16.gmra.mxu0 %v138
  %v278 = vpop.f32.mrf.mxu0
  %v279 = vadd.f32 0.0, %v278
  %v280 = vpop.f32.mrf.mxu0
  %v281 = vpop.f32.mrf.mxu0
  %v282 = vadd.f32 0.0, %v281
  %v283 = vpop.f32.mrf.mxu0
  %284 = vmatprep.mubr.bf16.mxu0 0
  %285 = vmatmul.mubr.bf16.gmra.mxu0 %v139
  %v286 = vpop.f32.mrf.mxu0
  %v287 = vadd.f32 0.0, %v286
  %v288 = vpop.f32.mrf.mxu0
  %v289 = vpop.f32.mrf.mxu0
  %v290 = vadd.f32 0.0, %v289
  %v291 = vpop.f32.mrf.mxu0
  %292 = vdwg.mxu0
  %v293 = vpack.c.bf16 %v234, %v231
  %v294 = vpack.c.bf16 %v242, %v239
  %v295 = vpack.c.bf16 %v250, %v247
  %v296 = vpack.c.bf16 %v258, %v255
  %v297 = vpack.c.bf16 %v266, %v263
  %v298 = vpack.c.bf16 %v274, %v271
  %v299 = vpack.c.bf16 %v282, %v279
  %v300 = vpack.c.bf16 %v290, %v287
  %v301 = vld [vmem:[%s5] sm:$0x1]
  %v303 = vlaneseq
  %v304 = vshrl.u32 %v303, 7
  %v305 = vsub.s32 0, %v304
  %v306 = vrot.slane %v301, %v305
  %v324 = vunpack.c.l.b16 %v36
  %v325 = vunpack.c.l.b16 %v37
  %v326 = vunpack.c.l.b16 %v38
  %v327 = vunpack.c.l.b16 %v39
  %v328 = vunpack.c.l.b16 %v40
  %v329 = vunpack.c.l.b16 %v41
  %v330 = vunpack.c.l.b16 %v42
  %v331 = vunpack.c.l.b16 %v43
  %v332 = vunpack.c.l.b16 %v44
  %v333 = vunpack.c.l.b16 %v45
  %v334 = vunpack.c.l.b16 %v46
  %v335 = vunpack.c.l.b16 %v47
  %v336 = vunpack.c.l.b16 %v48
  %v337 = vunpack.c.l.b16 %v49
  %v338 = vunpack.c.l.b16 %v50
  %v339 = vunpack.c.l.b16 %v51
  %v340 = vpack.c.b16 %v325, %v324
  %v341 = vpack.c.b16 %v327, %v326
  %v342 = vpack.c.b16 %v329, %v328
  %v343 = vpack.c.b16 %v331, %v330
  %v344 = vpack.c.b16 %v333, %v332
  %v345 = vpack.c.b16 %v335, %v334
  %v346 = vpack.c.b16 %v337, %v336
  %v347 = vpack.c.b16 %v339, %v338
  %356 = vmatprep.subr.bf16.mxu0 0
  %357 = vmatpush1.bf16.msra.mxu0 %v300
  %358 = vmatprep.subr.bf16.mxu0 0
  %359 = vmatpush1.bf16.msra.mxu0 %v299
  %360 = vmatprep.subr.bf16.mxu0 0
  %361 = vmatpush1.bf16.msra.mxu0 %v298
  %362 = vmatprep.subr.bf16.mxu0 0
  %363 = vmatpush1.bf16.msra.mxu0 %v297
  %364 = vmatprep.subr.bf16.mxu0 0
  %365 = vmatpush1.bf16.msra.mxu0 %v296
  %366 = vmatprep.subr.bf16.mxu0 0
  %367 = vmatpush1.bf16.msra.mxu0 %v295
  %368 = vmatprep.subr.bf16.mxu0 0
  %369 = vmatpush1.bf16.msra.mxu0 %v294
  %370 = vmatprep.subr.bf16.mxu0 0
  %371 = vmatpush1.bf16.msra.mxu0 %v293
  %372 = vmatprep.subr.bf16.mxu0 0
  %373 = vmatpush2.bf16.msra.mxu0 0
  %374 = vmatprep.subr.bf16.mxu0 0
  %375 = vmatpush2.bf16.msra.mxu0 0
  %376 = vmatprep.subr.bf16.mxu0 0
  %377 = vmatpush2.bf16.msra.mxu0 0
  %378 = vmatprep.subr.bf16.mxu0 0
  %379 = vmatpush2.bf16.msra.mxu0 0
  %380 = vmatprep.subr.bf16.mxu0 0
  %381 = vmatpush2.bf16.msra.mxu0 0
  %382 = vmatprep.subr.bf16.mxu0 0
  %383 = vmatpush2.bf16.msra.mxu0 0
  %384 = vmatprep.subr.bf16.mxu0 0
  %385 = vmatpush2.bf16.msra.mxu0 0
  %386 = vmatprep.subr.bf16.mxu0 0
  %387 = vmatpush2.bf16.msra.mxu0 0
  %388 = vmatprep.mubr.bf16.mxu0 0
  %389 = vmatmul.mubr.bf16.gmra.mxu0 %v340
  %v390 = vpop.f32.mrf.mxu0
  %v391 = vadd.f32 %v306, %v390
  %v392 = vpop.f32.mrf.mxu0
  %v393 = vpop.f32.mrf.mxu0
  %v394 = vadd.f32 %v306, %v393
  %v395 = vpop.f32.mrf.mxu0
  %396 = vmatprep.mubr.bf16.mxu0 0
  %397 = vmatmul.mubr.bf16.gmra.mxu0 %v341
  %v398 = vpop.f32.mrf.mxu0
  %v399 = vadd.f32 %v306, %v398
  %v400 = vpop.f32.mrf.mxu0
  %v401 = vpop.f32.mrf.mxu0
  %v402 = vadd.f32 %v306, %v401
  %v403 = vpop.f32.mrf.mxu0
  %404 = vmatprep.mubr.bf16.mxu0 0
  %405 = vmatmul.mubr.bf16.gmra.mxu0 %v342
  %v406 = vpop.f32.mrf.mxu0
  %v407 = vadd.f32 %v306, %v406
  %v408 = vpop.f32.mrf.mxu0
  %v409 = vpop.f32.mrf.mxu0
  %v410 = vadd.f32 %v306, %v409
  %v411 = vpop.f32.mrf.mxu0
  %412 = vmatprep.mubr.bf16.mxu0 0
  %413 = vmatmul.mubr.bf16.gmra.mxu0 %v343
  %v414 = vpop.f32.mrf.mxu0
  %v415 = vadd.f32 %v306, %v414
  %v416 = vpop.f32.mrf.mxu0
  %v417 = vpop.f32.mrf.mxu0
  %v418 = vadd.f32 %v306, %v417
  %v419 = vpop.f32.mrf.mxu0
  %420 = vmatprep.mubr.bf16.mxu0 0
  %421 = vmatmul.mubr.bf16.gmra.mxu0 %v344
  %v422 = vpop.f32.mrf.mxu0
  %v423 = vadd.f32 %v306, %v422
  %v424 = vpop.f32.mrf.mxu0
  %v425 = vpop.f32.mrf.mxu0
  %v426 = vadd.f32 %v306, %v425
  %v427 = vpop.f32.mrf.mxu0
  %428 = vmatprep.mubr.bf16.mxu0 0
  %429 = vmatmul.mubr.bf16.gmra.mxu0 %v345
  %v430 = vpop.f32.mrf.mxu0
  %v431 = vadd.f32 %v306, %v430
  %v432 = vpop.f32.mrf.mxu0
  %v433 = vpop.f32.mrf.mxu0
  %v434 = vadd.f32 %v306, %v433
  %v435 = vpop.f32.mrf.mxu0
  %436 = vmatprep.mubr.bf16.mxu0 0
  %437 = vmatmul.mubr.bf16.gmra.mxu0 %v346
  %v438 = vpop.f32.mrf.mxu0
  %v439 = vadd.f32 %v306, %v438
  %v440 = vpop.f32.mrf.mxu0
  %v441 = vpop.f32.mrf.mxu0
  %v442 = vadd.f32 %v306, %v441
  %v443 = vpop.f32.mrf.mxu0
  %444 = vmatprep.mubr.bf16.mxu0 0
  %445 = vmatmul.mubr.bf16.gmra.mxu0 %v347
  %v446 = vpop.f32.mrf.mxu0
  %v447 = vadd.f32 %v306, %v446
  %v448 = vpop.f32.mrf.mxu0
  %v449 = vpop.f32.mrf.mxu0
  %v450 = vadd.f32 %v306, %v449
  %v451 = vpop.f32.mrf.mxu0
  %452 = vdwg.mxu0
  %454 = vset.pattern.permute.xlu0 0
  %455 = vperm.xlu0 %454, %v52
  %v456 = vpop.permute.xlu0 %455
  %459 = vset.pattern.permute.xlu0 0
  %460 = vperm.xlu0 %459, %v53
  %v461 = vpop.permute.xlu0 %460
  %464 = vset.pattern.permute.xlu0 0
  %465 = vperm.xlu0 %464, %v54
  %v466 = vpop.permute.xlu0 %465
  %469 = vset.pattern.permute.xlu0 0
  %470 = vperm.xlu0 %469, %v55
  %v471 = vpop.permute.xlu0 %470
  %474 = vset.pattern.permute.xlu0 0
  %475 = vperm.xlu0 %474, %v56
  %v476 = vpop.permute.xlu0 %475
  %479 = vset.pattern.permute.xlu0 0
  %480 = vperm.xlu0 %479, %v57
  %v481 = vpop.permute.xlu0 %480
  %484 = vset.pattern.permute.xlu0 0
  %485 = vperm.xlu0 %484, %v58
  %v486 = vpop.permute.xlu0 %485
  %489 = vset.pattern.permute.xlu0 0
  %490 = vperm.xlu0 %489, %v59
  %v491 = vpop.permute.xlu0 %490
  %494 = vset.pattern.permute.xlu0 0
  %495 = vperm.xlu0 %494, %v60
  %v496 = vpop.permute.xlu0 %495
  %499 = vset.pattern.permute.xlu0 0
  %500 = vperm.xlu0 %499, %v61
  %v501 = vpop.permute.xlu0 %500
  %504 = vset.pattern.permute.xlu0 0
  %505 = vperm.xlu0 %504, %v62
  %v506 = vpop.permute.xlu0 %505
  %509 = vset.pattern.permute.xlu0 0
  %510 = vperm.xlu0 %509, %v63
  %v511 = vpop.permute.xlu0 %510
  %514 = vset.pattern.permute.xlu0 0
  %515 = vperm.xlu0 %514, %v64
  %v516 = vpop.permute.xlu0 %515
  %519 = vset.pattern.permute.xlu0 0
  %520 = vperm.xlu0 %519, %v65
  %v521 = vpop.permute.xlu0 %520
  %524 = vset.pattern.permute.xlu0 0
  %525 = vperm.xlu0 %524, %v66
  %v526 = vpop.permute.xlu0 %525
  %529 = vset.pattern.permute.xlu0 0
  %530 = vperm.xlu0 %529, %v67
  %v531 = vpop.permute.xlu0 %530
  %v533 = vmul.f32 %v391, %v456
  %v534 = vmul.f32 %v394, %v461
  %v535 = vmul.f32 %v399, %v466
  %v536 = vmul.f32 %v402, %v471
  %v537 = vmul.f32 %v407, %v476
  %v538 = vmul.f32 %v410, %v481
  %v539 = vmul.f32 %v415, %v486
  %v540 = vmul.f32 %v418, %v491
  %v541 = vmul.f32 %v423, %v496
  %v542 = vmul.f32 %v426, %v501
  %v543 = vmul.f32 %v431, %v506
  %v544 = vmul.f32 %v434, %v511
  %v545 = vmul.f32 %v439, %v516
  %v546 = vmul.f32 %v442, %v521
  %v547 = vmul.f32 %v447, %v526
  %v548 = vmul.f32 %v450, %v531
  %v549 = vmax.f32 %v533, 0.0
  %v550 = vmax.f32 %v534, 0.0
  %v551 = vmax.f32 %v535, 0.0
  %v552 = vmax.f32 %v536, 0.0
  %v553 = vmax.f32 %v537, 0.0
  %v554 = vmax.f32 %v538, 0.0
  %v555 = vmax.f32 %v539, 0.0
  %v556 = vmax.f32 %v540, 0.0
  %v557 = vmax.f32 %v541, 0.0
  %v558 = vmax.f32 %v542, 0.0
  %v559 = vmax.f32 %v543, 0.0
  %v560 = vmax.f32 %v544, 0.0
  %v561 = vmax.f32 %v545, 0.0
  %v562 = vmax.f32 %v546, 0.0
  %v563 = vmax.f32 %v547, 0.0
  %v564 = vmax.f32 %v548, 0.0
  %v565 = vld [vmem:[%s2] sm:$0xf]
  %v566 = vld [vmem:[%s2 + $0x4] sm:$0xf]
  %v567 = vld [vmem:[%s2 + $0x8] sm:$0xf]
  %v568 = vld [vmem:[%s2 + $0xc] sm:$0xf]
  %v569 = vld [vmem:[%s2 + $0x10] sm:$0xf]
  %v570 = vld [vmem:[%s2 + $0x14] sm:$0xf]
  %v571 = vld [vmem:[%s2 + $0x18] sm:$0xf]
  %v572 = vld [vmem:[%s2 + $0x1c] sm:$0xf]
  %v573 = vld [vmem:[%s2 + $0x20] sm:$0xf]
  %v574 = vld [vmem:[%s2 + $0x24] sm:$0xf]
  %v575 = vld [vmem:[%s2 + $0x28] sm:$0xf]
  %v576 = vld [vmem:[%s2 + $0x2c] sm:$0xf]
  %v577 = vld [vmem:[%s2 + $0x30] sm:$0xf]
  %v578 = vld [vmem:[%s2 + $0x34] sm:$0xf]
  %v579 = vld [vmem:[%s2 + $0x38] sm:$0xf]
  %v580 = vld [vmem:[%s2 + $0x3c] sm:$0xf]
  %v581 = vunpack.c.l.bf16 %v565
  %v582 = vunpack.c.l.bf16 %v566
  %v583 = vunpack.c.l.bf16 %v567
  %v584 = vunpack.c.l.bf16 %v568
  %v585 = vunpack.c.l.bf16 %v569
  %v586 = vunpack.c.l.bf16 %v570
  %v587 = vunpack.c.l.bf16 %v571
  %v588 = vunpack.c.l.bf16 %v572
  %v589 = vunpack.c.l.bf16 %v573
  %v590 = vunpack.c.l.bf16 %v574
  %v591 = vunpack.c.l.bf16 %v575
  %v592 = vunpack.c.l.bf16 %v576
  %v593 = vunpack.c.l.bf16 %v577
  %v594 = vunpack.c.l.bf16 %v578
  %v595 = vunpack.c.l.bf16 %v579
  %v596 = vunpack.c.l.bf16 %v580
  %v597 = vmax.f32 %v581, 0.0
  %v598 = vmax.f32 %v582, 0.0
  %v599 = vmax.f32 %v583, 0.0
  %v600 = vmax.f32 %v584, 0.0
  %v601 = vmax.f32 %v585, 0.0
  %v602 = vmax.f32 %v586, 0.0
  %v603 = vmax.f32 %v587, 0.0
  %v604 = vmax.f32 %v588, 0.0
  %v605 = vmax.f32 %v589, 0.0
  %v606 = vmax.f32 %v590, 0.0
  %v607 = vmax.f32 %v591, 0.0
  %v608 = vmax.f32 %v592, 0.0
  %v609 = vmax.f32 %v593, 0.0
  %v610 = vmax.f32 %v594, 0.0
  %v611 = vmax.f32 %v595, 0.0
  %v612 = vmax.f32 %v596, 0.0
  %v613 = vpack.c.bf16 %v550, %v549
  %v614 = vpack.c.bf16 %v598, %v597
  %v615 = vpack.c.bf16 %v552, %v551
  %v616 = vpack.c.bf16 %v600, %v599
  %v617 = vpack.c.bf16 %v554, %v553
  %v618 = vpack.c.bf16 %v602, %v601
  %v619 = vpack.c.bf16 %v556, %v555
  %v620 = vpack.c.bf16 %v604, %v603
  %v621 = vpack.c.bf16 %v558, %v557
  %v622 = vpack.c.bf16 %v606, %v605
  %v623 = vpack.c.bf16 %v560, %v559
  %v624 = vpack.c.bf16 %v608, %v607
  %v625 = vpack.c.bf16 %v562, %v561
  %v626 = vpack.c.bf16 %v610, %v609
  %v627 = vpack.c.bf16 %v564, %v563
  %v628 = vpack.c.bf16 %v612, %v611
  %v629 = vld [vmem:[%s6] sm:$0xf]
  %v630 = vld [vmem:[%s6 + $0x4] sm:$0xf]
  %v631 = vld [vmem:[%s6 + $0x8] sm:$0xf]
  %v632 = vld [vmem:[%s6 + $0xc] sm:$0xf]
  %v633 = vld [vmem:[%s6 + $0x10] sm:$0xf]
  %v634 = vld [vmem:[%s6 + $0x14] sm:$0xf]
  %v635 = vld [vmem:[%s6 + $0x18] sm:$0xf]
  %v636 = vld [vmem:[%s6 + $0x1c] sm:$0xf]
  %v637 = vld [vmem:[%s6 + $0x20] sm:$0xf]
  %v638 = vld [vmem:[%s6 + $0x24] sm:$0xf]
  %v639 = vld [vmem:[%s6 + $0x28] sm:$0xf]
  %v640 = vld [vmem:[%s6 + $0x2c] sm:$0xf]
  %v641 = vld [vmem:[%s6 + $0x30] sm:$0xf]
  %v642 = vld [vmem:[%s6 + $0x34] sm:$0xf]
  %v643 = vld [vmem:[%s6 + $0x38] sm:$0xf]
  %v644 = vld [vmem:[%s6 + $0x3c] sm:$0xf]
  %v645 = vld [vmem:[%s6 + $0x40] sm:$0xf]
  %v646 = vld [vmem:[%s6 + $0x44] sm:$0xf]
  %v647 = vld [vmem:[%s6 + $0x48] sm:$0xf]
  %v648 = vld [vmem:[%s6 + $0x4c] sm:$0xf]
  %v649 = vld [vmem:[%s6 + $0x50] sm:$0xf]
  %v650 = vld [vmem:[%s6 + $0x54] sm:$0xf]
  %v651 = vld [vmem:[%s6 + $0x58] sm:$0xf]
  %v652 = vld [vmem:[%s6 + $0x5c] sm:$0xf]
  %v653 = vld [vmem:[%s6 + $0x60] sm:$0xf]
  %v654 = vld [vmem:[%s6 + $0x64] sm:$0xf]
  %v655 = vld [vmem:[%s6 + $0x68] sm:$0xf]
  %v656 = vld [vmem:[%s6 + $0x6c] sm:$0xf]
  %v657 = vld [vmem:[%s6 + $0x70] sm:$0xf]
  %v658 = vld [vmem:[%s6 + $0x74] sm:$0xf]
  %v659 = vld [vmem:[%s6 + $0x78] sm:$0xf]
  %v660 = vld [vmem:[%s6 + $0x7c] sm:$0xf]
  %v693 = vunpack.c.l.b16 %v629
  %v694 = vunpack.c.l.b16 %v630
  %v695 = vunpack.c.l.b16 %v631
  %v696 = vunpack.c.l.b16 %v632
  %v697 = vunpack.c.l.b16 %v633
  %v698 = vunpack.c.l.b16 %v634
  %v699 = vunpack.c.l.b16 %v635
  %v700 = vunpack.c.l.b16 %v636
  %v701 = vunpack.c.l.b16 %v637
  %v702 = vunpack.c.l.b16 %v638
  %v703 = vunpack.c.l.b16 %v639
  %v704 = vunpack.c.l.b16 %v640
  %v705 = vunpack.c.l.b16 %v641
  %v706 = vunpack.c.l.b16 %v642
  %v707 = vunpack.c.l.b16 %v643
  %v708 = vunpack.c.l.b16 %v644
  %v709 = vunpack.c.l.b16 %v645
  %v710 = vunpack.c.l.b16 %v646
  %v711 = vunpack.c.l.b16 %v647
  %v712 = vunpack.c.l.b16 %v648
  %v713 = vunpack.c.l.b16 %v649
  %v714 = vunpack.c.l.b16 %v650
  %v715 = vunpack.c.l.b16 %v651
  %v716 = vunpack.c.l.b16 %v652
  %v717 = vunpack.c.l.b16 %v653
  %v718 = vunpack.c.l.b16 %v654
  %v719 = vunpack.c.l.b16 %v655
  %v720 = vunpack.c.l.b16 %v656
  %v721 = vunpack.c.l.b16 %v657
  %v722 = vunpack.c.l.b16 %v658
  %v723 = vunpack.c.l.b16 %v659
  %v724 = vunpack.c.l.b16 %v660
  %v725 = vpack.c.b16 %v694, %v693
  %v726 = vpack.c.b16 %v696, %v695
  %v727 = vpack.c.b16 %v698, %v697
  %v728 = vpack.c.b16 %v700, %v699
  %v729 = vpack.c.b16 %v702, %v701
  %v730 = vpack.c.b16 %v704, %v703
  %v731 = vpack.c.b16 %v706, %v705
  %v732 = vpack.c.b16 %v708, %v707
  %v733 = vpack.c.b16 %v710, %v709
  %v734 = vpack.c.b16 %v712, %v711
  %v735 = vpack.c.b16 %v714, %v713
  %v736 = vpack.c.b16 %v716, %v715
  %v737 = vpack.c.b16 %v718, %v717
  %v738 = vpack.c.b16 %v720, %v719
  %v739 = vpack.c.b16 %v722, %v721
  %v740 = vpack.c.b16 %v724, %v723
  %757 = vmatprep.subr.bf16.mxu0 0
  %758 = vmatpush1.bf16.msra.mxu0 %v732
  %759 = vmatprep.subr.bf16.mxu0 0
  %760 = vmatpush1.bf16.msra.mxu0 %v731
  %761 = vmatprep.subr.bf16.mxu0 0
  %762 = vmatpush1.bf16.msra.mxu0 %v730
  %763 = vmatprep.subr.bf16.mxu0 0
  %764 = vmatpush1.bf16.msra.mxu0 %v729
  %765 = vmatprep.subr.bf16.mxu0 0
  %766 = vmatpush1.bf16.msra.mxu0 %v728
  %767 = vmatprep.subr.bf16.mxu0 0
  %768 = vmatpush1.bf16.msra.mxu0 %v727
  %769 = vmatprep.subr.bf16.mxu0 0
  %770 = vmatpush1.bf16.msra.mxu0 %v726
  %771 = vmatprep.subr.bf16.mxu0 0
  %772 = vmatpush1.bf16.msra.mxu0 %v725
  %773 = vmatprep.subr.bf16.mxu0 0
  %774 = vmatpush2.bf16.msra.mxu0 %v740
  %775 = vmatprep.subr.bf16.mxu0 0
  %776 = vmatpush2.bf16.msra.mxu0 %v739
  %777 = vmatprep.subr.bf16.mxu0 0
  %778 = vmatpush2.bf16.msra.mxu0 %v738
  %779 = vmatprep.subr.bf16.mxu0 0
  %780 = vmatpush2.bf16.msra.mxu0 %v737
  %781 = vmatprep.subr.bf16.mxu0 0
  %782 = vmatpush2.bf16.msra.mxu0 %v736
  %783 = vmatprep.subr.bf16.mxu0 0
  %784 = vmatpush2.bf16.msra.mxu0 %v735
  %785 = vmatprep.subr.bf16.mxu0 0
  %786 = vmatpush2.bf16.msra.mxu0 %v734
  %787 = vmatprep.subr.bf16.mxu0 0
  %788 = vmatpush2.bf16.msra.mxu0 %v733
  %789 = vmatprep.mubr.bf16.mxu0 %v614
  %790 = vmatmul.mubr.bf16.gmra.mxu0 %v613
  %v791 = vpop.f32.mrf.mxu0
  %v792 = vadd.f32 0.0, %v791
  %v793 = vpop.f32.mrf.mxu0
  %v794 = vpop.f32.mrf.mxu0
  %v795 = vadd.f32 0.0, %v794
  %v796 = vpop.f32.mrf.mxu0
  %797 = vmatprep.mubr.bf16.mxu0 %v616
  %798 = vmatmul.mubr.bf16.gmra.mxu0 %v615
  %v799 = vpop.f32.mrf.mxu0
  %v800 = vadd.f32 0.0, %v799
  %v801 = vpop.f32.mrf.mxu0
  %v802 = vpop.f32.mrf.mxu0
  %v803 = vadd.f32 0.0, %v802
  %v804 = vpop.f32.mrf.mxu0
  %805 = vmatprep.mubr.bf16.mxu0 %v618
  %806 = vmatmul.mubr.bf16.gmra.mxu0 %v617
  %v807 = vpop.f32.mrf.mxu0
  %v808 = vadd.f32 0.0, %v807
  %v809 = vpop.f32.mrf.mxu0
  %v810 = vpop.f32.mrf.mxu0
  %v811 = vadd.f32 0.0, %v810
  %v812 = vpop.f32.mrf.mxu0
  %813 = vmatprep.mubr.bf16.mxu0 %v620
  %814 = vmatmul.mubr.bf16.gmra.mxu0 %v619
  %v815 = vpop.f32.mrf.mxu0
  %v816 = vadd.f32 0.0, %v815
  %v817 = vpop.f32.mrf.mxu0
  %v818 = vpop.f32.mrf.mxu0
  %v819 = vadd.f32 0.0, %v818
  %v820 = vpop.f32.mrf.mxu0
  %821 = vmatprep.mubr.bf16.mxu0 %v622
  %822 = vmatmul.mubr.bf16.gmra.mxu0 %v621
  %v823 = vpop.f32.mrf.mxu0
  %v824 = vadd.f32 0.0, %v823
  %v825 = vpop.f32.mrf.mxu0
  %v826 = vpop.f32.mrf.mxu0
  %v827 = vadd.f32 0.0, %v826
  %v828 = vpop.f32.mrf.mxu0
  %829 = vmatprep.mubr.bf16.mxu0 %v624
  %830 = vmatmul.mubr.bf16.gmra.mxu0 %v623
  %v831 = vpop.f32.mrf.mxu0
  %v832 = vadd.f32 0.0, %v831
  %v833 = vpop.f32.mrf.mxu0
  %v834 = vpop.f32.mrf.mxu0
  %v835 = vadd.f32 0.0, %v834
  %v836 = vpop.f32.mrf.mxu0
  %837 = vmatprep.mubr.bf16.mxu0 %v626
  %838 = vmatmul.mubr.bf16.gmra.mxu0 %v625
  %v839 = vpop.f32.mrf.mxu0
  %v840 = vadd.f32 0.0, %v839
  %v841 = vpop.f32.mrf.mxu0
  %v842 = vpop.f32.mrf.mxu0
  %v843 = vadd.f32 0.0, %v842
  %v844 = vpop.f32.mrf.mxu0
  %845 = vmatprep.mubr.bf16.mxu0 %v628
  %846 = vmatmul.mubr.bf16.gmra.mxu0 %v627
  %v847 = vpop.f32.mrf.mxu0
  %v848 = vadd.f32 0.0, %v847
  %v849 = vpop.f32.mrf.mxu0
  %v850 = vpop.f32.mrf.mxu0
  %v851 = vadd.f32 0.0, %v850
  %v852 = vpop.f32.mrf.mxu0
  %853 = vdwg.mxu0
  %v854 = vpack.c.bf16 %v795, %v792
  %v855 = vpack.c.bf16 %v803, %v800
  %v856 = vpack.c.bf16 %v811, %v808
  %v857 = vpack.c.bf16 %v819, %v816
  %v858 = vpack.c.bf16 %v827, %v824
  %v859 = vpack.c.bf16 %v835, %v832
  %v860 = vpack.c.bf16 %v843, %v840
  %v861 = vpack.c.bf16 %v851, %v848
  %v862 = vld [vmem:[%s7] sm:$0x1]
  %v864 = vlaneseq
  %v865 = vshrl.u32 %v864, 7
  %v866 = vsub.s32 0, %v865
  %v867 = vrot.slane %v862, %v866
  %869 = vmatprep.subr.bf16.mxu0 0
  %870 = vmatpush1.bf16.msra.mxu0 %v861
  %871 = vmatprep.subr.bf16.mxu0 0
  %872 = vmatpush1.bf16.msra.mxu0 %v860
  %873 = vmatprep.subr.bf16.mxu0 0
  %874 = vmatpush1.bf16.msra.mxu0 %v859
  %875 = vmatprep.subr.bf16.mxu0 0
  %876 = vmatpush1.bf16.msra.mxu0 %v858
  %877 = vmatprep.subr.bf16.mxu0 0
  %878 = vmatpush1.bf16.msra.mxu0 %v857
  %879 = vmatprep.subr.bf16.mxu0 0
  %880 = vmatpush1.bf16.msra.mxu0 %v856
  %881 = vmatprep.subr.bf16.mxu0 0
  %882 = vmatpush1.bf16.msra.mxu0 %v855
  %883 = vmatprep.subr.bf16.mxu0 0
  %884 = vmatpush1.bf16.msra.mxu0 %v854
  %885 = vmatprep.subr.bf16.mxu0 0
  %886 = vmatpush2.bf16.msra.mxu0 0
  %887 = vmatprep.subr.bf16.mxu0 0
  %888 = vmatpush2.bf16.msra.mxu0 0
  %889 = vmatprep.subr.bf16.mxu0 0
  %890 = vmatpush2.bf16.msra.mxu0 0
  %891 = vmatprep.subr.bf16.mxu0 0
  %892 = vmatpush2.bf16.msra.mxu0 0
  %893 = vmatprep.subr.bf16.mxu0 0
  %894 = vmatpush2.bf16.msra.mxu0 0
  %895 = vmatprep.subr.bf16.mxu0 0
  %896 = vmatpush2.bf16.msra.mxu0 0
  %897 = vmatprep.subr.bf16.mxu0 0
  %898 = vmatpush2.bf16.msra.mxu0 0
  %899 = vmatprep.subr.bf16.mxu0 0
  %900 = vmatpush2.bf16.msra.mxu0 0
  %901 = vmatprep.mubr.bf16.mxu0 0
  %902 = vmatmul.mubr.bf16.gmra.mxu0 %v340
  %v903 = vpop.f32.mrf.mxu0
  %v904 = vadd.f32 %v867, %v903
  %v905 = vpop.f32.mrf.mxu0
  %v906 = vpop.f32.mrf.mxu0
  %v907 = vadd.f32 %v867, %v906
  %v908 = vpop.f32.mrf.mxu0
  %909 = vmatprep.mubr.bf16.mxu0 0
  %910 = vmatmul.mubr.bf16.gmra.mxu0 %v341
  %v911 = vpop.f32.mrf.mxu0
  %v912 = vadd.f32 %v867, %v911
  %v913 = vpop.f32.mrf.mxu0
  %v914 = vpop.f32.mrf.mxu0
  %v915 = vadd.f32 %v867, %v914
  %v916 = vpop.f32.mrf.mxu0
  %917 = vmatprep.mubr.bf16.mxu0 0
  %918 = vmatmul.mubr.bf16.gmra.mxu0 %v342
  %v919 = vpop.f32.mrf.mxu0
  %v920 = vadd.f32 %v867, %v919
  %v921 = vpop.f32.mrf.mxu0
  %v922 = vpop.f32.mrf.mxu0
  %v923 = vadd.f32 %v867, %v922
  %v924 = vpop.f32.mrf.mxu0
  %925 = vmatprep.mubr.bf16.mxu0 0
  %926 = vmatmul.mubr.bf16.gmra.mxu0 %v343
  %v927 = vpop.f32.mrf.mxu0
  %v928 = vadd.f32 %v867, %v927
  %v929 = vpop.f32.mrf.mxu0
  %v930 = vpop.f32.mrf.mxu0
  %v931 = vadd.f32 %v867, %v930
  %v932 = vpop.f32.mrf.mxu0
  %933 = vmatprep.mubr.bf16.mxu0 0
  %934 = vmatmul.mubr.bf16.gmra.mxu0 %v344
  %v935 = vpop.f32.mrf.mxu0
  %v936 = vadd.f32 %v867, %v935
  %v937 = vpop.f32.mrf.mxu0
  %v938 = vpop.f32.mrf.mxu0
  %v939 = vadd.f32 %v867, %v938
  %v940 = vpop.f32.mrf.mxu0
  %941 = vmatprep.mubr.bf16.mxu0 0
  %942 = vmatmul.mubr.bf16.gmra.mxu0 %v345
  %v943 = vpop.f32.mrf.mxu0
  %v944 = vadd.f32 %v867, %v943
  %v945 = vpop.f32.mrf.mxu0
  %v946 = vpop.f32.mrf.mxu0
  %v947 = vadd.f32 %v867, %v946
  %v948 = vpop.f32.mrf.mxu0
  %949 = vmatprep.mubr.bf16.mxu0 0
  %950 = vmatmul.mubr.bf16.gmra.mxu0 %v346
  %v951 = vpop.f32.mrf.mxu0
  %v952 = vadd.f32 %v867, %v951
  %v953 = vpop.f32.mrf.mxu0
  %v954 = vpop.f32.mrf.mxu0
  %v955 = vadd.f32 %v867, %v954
  %v956 = vpop.f32.mrf.mxu0
  %957 = vmatprep.mubr.bf16.mxu0 0
  %958 = vmatmul.mubr.bf16.gmra.mxu0 %v347
  %v959 = vpop.f32.mrf.mxu0
  %v960 = vadd.f32 %v867, %v959
  %v961 = vpop.f32.mrf.mxu0
  %v962 = vpop.f32.mrf.mxu0
  %v963 = vadd.f32 %v867, %v962
  %v964 = vpop.f32.mrf.mxu0
  %965 = vdwg.mxu0
  %v966 = vmax.f32 %v904, 0.0
  %v967 = vmax.f32 %v907, 0.0
  %v968 = vmax.f32 %v912, 0.0
  %v969 = vmax.f32 %v915, 0.0
  %v970 = vmax.f32 %v920, 0.0
  %v971 = vmax.f32 %v923, 0.0
  %v972 = vmax.f32 %v928, 0.0
  %v973 = vmax.f32 %v931, 0.0
  %v974 = vmax.f32 %v936, 0.0
  %v975 = vmax.f32 %v939, 0.0
  %v976 = vmax.f32 %v944, 0.0
  %v977 = vmax.f32 %v947, 0.0
  %v978 = vmax.f32 %v952, 0.0
  %v979 = vmax.f32 %v955, 0.0
  %v980 = vmax.f32 %v960, 0.0
  %v981 = vmax.f32 %v963, 0.0
  %v982 = vmul.f32 %v966, %v456
  %v983 = vmul.f32 %v967, %v461
  %v984 = vmul.f32 %v968, %v466
  %v985 = vmul.f32 %v969, %v471
  %v986 = vmul.f32 %v970, %v476
  %v987 = vmul.f32 %v971, %v481
  %v988 = vmul.f32 %v972, %v486
  %v989 = vmul.f32 %v973, %v491
  %v990 = vmul.f32 %v974, %v496
  %v991 = vmul.f32 %v975, %v501
  %v992 = vmul.f32 %v976, %v506
  %v993 = vmul.f32 %v977, %v511
  %v994 = vmul.f32 %v978, %v516
  %v995 = vmul.f32 %v979, %v521
  %v996 = vmul.f32 %v980, %v526
  %v997 = vmul.f32 %v981, %v531
  %v998 = vld [vmem:[%s8] sm:$0xf]
  %v999 = vunpack.c.l.bf16 %v998
  %1000 = vadd.xlane.f32.xlu0 %v999
  %v1001 = vpop.xlane.xlu0 %1000
  %v1002 = vmax.f32 %v1001, 1.0
  %v1003 = vpack.c.bf16 %v983, %v982
  %v1004 = vpack.c.bf16 %v985, %v984
  %v1005 = vpack.c.bf16 %v987, %v986
  %v1006 = vpack.c.bf16 %v989, %v988
  %v1007 = vpack.c.bf16 %v991, %v990
  %v1008 = vpack.c.bf16 %v993, %v992
  %v1009 = vpack.c.bf16 %v995, %v994
  %v1010 = vpack.c.bf16 %v997, %v996
  %1011 = vmatprep.subr.bf16.mxu0 0
  %1012 = vmatpush1.bf16.msra.mxu0 %v1010
  %1013 = vmatprep.subr.bf16.mxu0 0
  %1014 = vmatpush1.bf16.msra.mxu0 %v1009
  %1015 = vmatprep.subr.bf16.mxu0 0
  %1016 = vmatpush1.bf16.msra.mxu0 %v1008
  %1017 = vmatprep.subr.bf16.mxu0 0
  %1018 = vmatpush1.bf16.msra.mxu0 %v1007
  %1019 = vmatprep.subr.bf16.mxu0 0
  %1020 = vmatpush1.bf16.msra.mxu0 %v1006
  %1021 = vmatprep.subr.bf16.mxu0 0
  %1022 = vmatpush1.bf16.msra.mxu0 %v1005
  %1023 = vmatprep.subr.bf16.mxu0 0
  %1024 = vmatpush1.bf16.msra.mxu0 %v1004
  %1025 = vmatprep.subr.bf16.mxu0 0
  %1026 = vmatpush1.bf16.msra.mxu0 %v1003
  %1027 = vmatprep.subr.bf16.mxu0 0
  %1028 = vmatpush2.bf16.msra.mxu0 0
  %1029 = vmatprep.subr.bf16.mxu0 0
  %1030 = vmatpush2.bf16.msra.mxu0 0
  %1031 = vmatprep.subr.bf16.mxu0 0
  %1032 = vmatpush2.bf16.msra.mxu0 0
  %1033 = vmatprep.subr.bf16.mxu0 0
  %1034 = vmatpush2.bf16.msra.mxu0 0
  %1035 = vmatprep.subr.bf16.mxu0 0
  %1036 = vmatpush2.bf16.msra.mxu0 0
  %1037 = vmatprep.subr.bf16.mxu0 0
  %1038 = vmatpush2.bf16.msra.mxu0 0
  %1039 = vmatprep.subr.bf16.mxu0 0
  %1040 = vmatpush2.bf16.msra.mxu0 0
  %1041 = vmatprep.subr.bf16.mxu0 0
  %1042 = vmatpush2.bf16.msra.mxu0 0
  %1043 = vmatprep.mubr.bf16.mxu0 0
  %1044 = vmatmul.mubr.bf16.gmra.mxu0 %v998
  %v1045 = vpop.f32.mrf.mxu0
  %v1046 = vadd.f32 0.0, %v1045
  %v1047 = vpop.f32.mrf.mxu0
  %v1048 = vpop.f32.mrf.mxu0
  %v1049 = vpop.f32.mrf.mxu0
  %1050 = vdwg.mxu0
  %v1051 = vrcp.pop %v1002
  %v1052 = vmul.f32 %v1046, %v1051
  %v1053 = vld [vmem:[%s9] sm:$0xf]
  %v1054 = vpack.c.bf16 %v534, %v533
  %v1055 = vpack.c.bf16 %v536, %v535
  %v1056 = vpack.c.bf16 %v538, %v537
  %v1057 = vpack.c.bf16 %v540, %v539
  %v1058 = vpack.c.bf16 %v542, %v541
  %v1059 = vpack.c.bf16 %v544, %v543
  %v1060 = vpack.c.bf16 %v546, %v545
  %v1061 = vpack.c.bf16 %v548, %v547
  %1062 = vmatprep.subr.bf16.mxu0 0
  %1063 = vmatpush1.bf16.msra.mxu0 %v1061
  %1064 = vmatprep.subr.bf16.mxu0 0
  %1065 = vmatpush1.bf16.msra.mxu0 %v1060
  %1066 = vmatprep.subr.bf16.mxu0 0
  %1067 = vmatpush1.bf16.msra.mxu0 %v1059
  %1068 = vmatprep.subr.bf16.mxu0 0
  %1069 = vmatpush1.bf16.msra.mxu0 %v1058
  %1070 = vmatprep.subr.bf16.mxu0 0
  %1071 = vmatpush1.bf16.msra.mxu0 %v1057
  %1072 = vmatprep.subr.bf16.mxu0 0
  %1073 = vmatpush1.bf16.msra.mxu0 %v1056
  %1074 = vmatprep.subr.bf16.mxu0 0
  %1075 = vmatpush1.bf16.msra.mxu0 %v1055
  %1076 = vmatprep.subr.bf16.mxu0 0
  %1077 = vmatpush1.bf16.msra.mxu0 %v1054
  %1078 = vmatprep.subr.bf16.mxu0 0
  %1079 = vmatpush2.bf16.msra.mxu0 0
  %1080 = vmatprep.subr.bf16.mxu0 0
  %1081 = vmatpush2.bf16.msra.mxu0 0
  %1082 = vmatprep.subr.bf16.mxu0 0
  %1083 = vmatpush2.bf16.msra.mxu0 0
  %1084 = vmatprep.subr.bf16.mxu0 0
  %1085 = vmatpush2.bf16.msra.mxu0 0
  %1086 = vmatprep.subr.bf16.mxu0 0
  %1087 = vmatpush2.bf16.msra.mxu0 0
  %1088 = vmatprep.subr.bf16.mxu0 0
  %1089 = vmatpush2.bf16.msra.mxu0 0
  %1090 = vmatprep.subr.bf16.mxu0 0
  %1091 = vmatpush2.bf16.msra.mxu0 0
  %1092 = vmatprep.subr.bf16.mxu0 0
  %1093 = vmatpush2.bf16.msra.mxu0 0
  %1094 = vmatprep.mubr.bf16.mxu0 0
  %1095 = vmatmul.mubr.bf16.gmra.mxu0 %v1053
  %v1096 = vpop.f32.mrf.mxu0
  %v1097 = vadd.f32 0.0, %v1096
  %v1098 = vpop.f32.mrf.mxu0
  %v1099 = vpop.f32.mrf.mxu0
  %v1100 = vpop.f32.mrf.mxu0
  %1101 = vdwg.mxu0
  %1102 = vst [vmem:[%s10] sm:$0xff] %v1052
  %1103 = vst [vmem:[%s10 + $0x8] sm:$0xff] %v1097
  // Predicated region
  $region42: #{rumor_gcn_forward.1} parent=0 // pred_check
    _
  $region43: #{rumor_gcn_forward.1} parent=0 // pred_check_branch
    %1105 = sbr.rel (0) target = $region45
  $region44: #{rumor_gcn_forward.1} parent=0 // pred_region
    _
  $region45: #{rumor_gcn_forward.1} parent=0 // pred_fallthru
    _
  // Predicated region
  $region46: #{rumor_gcn_forward.1} parent=0 // pred_check
    _
  $region47: #{rumor_gcn_forward.1} parent=0 // pred_check_branch
    %1107 = sbr.rel (0) target = $region49
  $region48: #{rumor_gcn_forward.1} parent=0 // pred_region
    _
  $region49: #{rumor_gcn_forward.1} parent=0 // pred_fallthru
    _

</llo_original>
